<compile_context>
chip_gen: v5e
topology: v5e:2x2
jax: 0.10.0
libtpu: 0.0.40
codegen_flags: <defaults>
</compile_context>

<pallas_src>
import functools

import jax
import jax.numpy as jnp
from jax import lax
from jax.experimental import pallas as pl
from jax.experimental.pallas import tpu as pltpu


def _round_up(x, m):
    return (x + m - 1) // m * m


def _conv_windows(x_ref, w_ref, *, tho, two, n_dh, n_dw, k4):
    """Stride-s conv as n_dh*n_dw shifted-window matmuls on the s2d slab (f32 acc)."""
    hw = tho * two
    y = None
    for di in range(n_dh):
        for dj in range(n_dw):
            lhs = x_ref[di:di + tho, dj:dj + two, :].reshape(hw, k4)  # bf16
            part = jnp.dot(lhs, w_ref[di * n_dw + dj],
                           preferred_element_type=jnp.float32)
            y = part if y is None else y + part
    return y  # (hw, c_tile) f32


def _conv_in_lrelu_kernel(x_ref, w_ref, o_ref, *, tho, two, n_dh, n_dw, k4,
                          eps, slope):
    """Per (batch, cout-tile): fused conv -> InstanceNorm2d -> LeakyReLU."""
    y = _conv_windows(x_ref, w_ref, tho=tho, two=two, n_dh=n_dh, n_dw=n_dw, k4=k4)
    # One-pass stats: sum and sum-of-squares read y once; var = E[y^2] - mean^2.
    inv_hw = 1.0 / (tho * two)
    mean = jnp.sum(y, axis=0, keepdims=True) * inv_hw            # (1, Ct)
    ex2 = jnp.sum(y * y, axis=0, keepdims=True) * inv_hw         # (1, Ct)
    inv = lax.rsqrt(ex2 - mean * mean + eps)                     # EUP
    yc = y - mean
    # rsqrt scale and LeakyReLU slope folded into one per-element multiply.
    o_ref[...] = (yc * jnp.where(yc > 0, inv, inv * slope)).astype(o_ref.dtype)


def _conv_bias_lrelu_kernel(x_ref, w_ref, b_ref, o_ref, *, tho, two, n_dh, n_dw,
                            k4, slope):
    """norm=False path: fused conv (+bias) -> LeakyReLU."""
    y = _conv_windows(x_ref, w_ref, tho=tho, two=two, n_dh=n_dh, n_dw=n_dw, k4=k4)
    y = y + b_ref[...]
    o_ref[...] = jnp.where(y > 0, y, slope * y).astype(o_ref.dtype)


def _space_to_depth(x_nhwc, kh, kw, stride, padding, h_out, w_out):
    """(N,H,W,Cin) -> (N, Ho+kh/s-1, Wo+kw/s-1, s*s*Cin); 1x data, no im2col blowup."""
    n, h, w, cin = x_nhwc.shape
    n_dh, n_dw = kh // stride, kw // stride
    h2, w2 = h_out + n_dh - 1, w_out + n_dw - 1
    hp = _round_up(h + 2 * padding, stride)
    wp = _round_up(w + 2 * padding, stride)
    xp = jnp.pad(x_nhwc, ((0, 0),
                          (padding, hp - h - padding),
                          (padding, wp - w - padding),
                          (0, 0)))
    xs = xp.reshape(n, hp // stride, stride, wp // stride, stride, cin)
    xs = jnp.transpose(xs, (0, 1, 3, 2, 4, 5))
    xs = xs.reshape(n, hp // stride, wp // stride, stride * stride * cin)
    return xs[:, :h2, :w2, :], h2, w2


def _regroup_weight(weight_oihw, stride, c_pad):
    """(Cout,Cin,kh,kw) -> (n_dh*n_dw, s*s*Cin, Cout_pad) bf16, matching s2d layout."""
    cout, cin, kh, kw = weight_oihw.shape
    n_dh, n_dw = kh // stride, kw // stride
    wt = jnp.transpose(weight_oihw, (2, 3, 1, 0))              # (kh, kw, cin, cout)
    wt = wt.reshape(n_dh, stride, n_dw, stride, cin, cout)     # (di, pi, dj, pj, c, co)
    wt = jnp.transpose(wt, (0, 2, 1, 3, 4, 5))                 # (di, dj, pi, pj, c, co)
    wt = wt.reshape(n_dh * n_dw, stride * stride * cin, cout)
    wt = jnp.pad(wt, ((0, 0), (0, 0), (0, c_pad - cout)))
    return wt.astype(jnp.bfloat16)


def basic_block(x_nchw, weight_oihw, bias, *, stride=2, padding=1, norm=True,
                eps=1e-5, slope=0.2, out_dtype=None, nchw_output=True):
    """Forward pass of BasicBlock. x_nchw: (N, Cin, H, W) -> (N, Cout, H_out, W_out)."""
    n, cin, h, w = x_nchw.shape
    cout, cin_w, kh, kw = weight_oihw.shape
    assert cin == cin_w
    assert kh % stride == 0 and kw % stride == 0, (
        "space-to-depth conv decomposition needs kernel_size % stride == 0")

    h_out = (h + 2 * padding - kh) // stride + 1
    w_out = (w + 2 * padding - kw) // stride + 1
    hw = h_out * w_out
    n_dh, n_dw = kh // stride, kw // stride
    n_q = n_dh * n_dw
    k4 = stride * stride * cin
    out_dtype = x_nchw.dtype if out_dtype is None else jnp.dtype(out_dtype)
    esize = jnp.dtype(out_dtype).itemsize

    # NCHW -> NHWC, cast to bf16 before the single space-to-depth layout pass.
    x_nhwc = jnp.transpose(x_nchw, (0, 2, 3, 1)).astype(jnp.bfloat16)
    xs, h2, w2 = _space_to_depth(x_nhwc, kh, kw, stride, padding, h_out, w_out)
    # TODO(synk): optionally pad k4 up to 128 for tiny Cin if a layer turns out
    # MXU-bound (it inflates input HBM bytes, a loss for the mem-bound first layer).

    # Lane-dense Cout: pad to a multiple of 128; widen to 256 when it divides.
    c_pad = _round_up(cout, 128)
    c_tile = 256 if c_pad % 256 == 0 else 128

    # Clamp VMEM to the generation ceiling; auto-narrow c_tile before exceeding it.
    try:
        vmem_cap = int(pltpu.get_tpu_info().vmem_capacity_bytes)
    except Exception:
        vmem_cap = 64 * 1024 * 1024            # v7x floor as safe fallback
    budget = int(vmem_cap * 0.9)

    def _vmem_est(ct):
        x_b = h2 * w2 * k4 * 2                  # bf16 s2d slab
        w_b = n_q * k4 * ct * 2                 # bf16 weight tile
        o_b = hw * ct * esize                   # output tile
        tmp = 2 * hw * ct * 4 + 2 * hw * k4 * 2  # f32 y/centered + window staging
        return 2 * (x_b + w_b + o_b) + tmp      # x2: double-buffered blocks

    if c_tile > 128 and _vmem_est(c_tile) > budget:
        c_tile = 128
    # TODO(synk): if _vmem_est(128) still exceeds the budget (very large H*W on
    # v7x), add an H grid axis with a 1-row halo block + two-pass instance-norm
    # stats (sum/sumsq accumulator across H tiles).
    vmem_limit = min(budget, max(_vmem_est(c_tile) + (4 << 20), 32 << 20))

    w_mat = _regroup_weight(weight_oihw, stride, c_pad)
    n_ct = c_pad // c_tile

    # Keep the larger per-step operand VMEM-resident across the inner grid axis
    # (Pallas skips re-DMA when the block index repeats between steps).
    x_slab_bytes = h2 * w2 * k4 * 2
    w_tile_bytes = n_q * k4 * c_tile * 2
    if x_slab_bytes >= w_tile_bytes:
        grid = (n, n_ct)                        # input resident across inner cout axis
        x_map = lambda b, c: (b, 0, 0, 0)
        w_map = lambda b, c: (0, 0, c)
        b_map = lambda b, c: (0, c)
        o_map = lambda b, c: (b, 0, c)
    else:
        grid = (n_ct, n)                        # weights resident across inner batch axis
        x_map = lambda c, b: (b, 0, 0, 0)
        w_map = lambda c, b: (0, 0, c)
        b_map = lambda c, b: (0, c)
        o_map = lambda c, b: (b, 0, c)

    x_spec = pl.BlockSpec((None, h2, w2, k4), x_map)
    w_spec = pl.BlockSpec((n_q, k4, c_tile), w_map)
    o_spec = pl.BlockSpec((None, hw, c_tile), o_map)

    cost = pl.CostEstimate(
        flops=2 * n * hw * (kh * kw * cin) * c_pad,
        transcendentals=0,
        bytes_accessed=(xs.size * 2) + (w_mat.size * 2) + n * hw * c_pad * esize,
    )
    compiler_params = pltpu.CompilerParams(
        dimension_semantics=("parallel", "parallel"),
        vmem_limit_bytes=int(vmem_limit),
    )
    out_shape = jax.ShapeDtypeStruct((n, hw, c_pad), out_dtype)

    if norm:
        # Conv bias is exactly cancelled by the (non-affine) InstanceNorm mean
        # subtraction -> elided (saves a VPU pass over the slab + one DMA).
        kernel = functools.partial(_conv_in_lrelu_kernel, tho=h_out, two=w_out,
                                   n_dh=n_dh, n_dw=n_dw, k4=k4, eps=eps, slope=slope)
        out = pl.pallas_call(
            kernel,
            out_shape=out_shape,
            grid_spec=pltpu.PrefetchScalarGridSpec(
                num_scalar_prefetch=0, grid=grid,
                in_specs=[x_spec, w_spec], out_specs=o_spec),
            compiler_params=compiler_params,
            cost_estimate=cost,
        )(xs, w_mat)
    else:
        b_mat = jnp.pad(bias.astype(jnp.float32).reshape(1, cout),
                        ((0, 0), (0, c_pad - cout)))
        b_spec = pl.BlockSpec((1, c_tile), b_map)
        kernel = functools.partial(_conv_bias_lrelu_kernel, tho=h_out, two=w_out,
                                   n_dh=n_dh, n_dw=n_dw, k4=k4, slope=slope)
        out = pl.pallas_call(
            kernel,
            out_shape=out_shape,
            grid_spec=pltpu.PrefetchScalarGridSpec(
                num_scalar_prefetch=0, grid=grid,
                in_specs=[x_spec, w_spec, b_spec], out_specs=o_spec),
            compiler_params=compiler_params,
            cost_estimate=cost,
        )(xs, w_mat, b_mat)

    # (N, HW, Cout_pad) -> drop padded channels; optionally back to NCHW.
    out = out.reshape(n, h_out, w_out, c_pad)[..., :cout]
    if nchw_output:
        out = jnp.transpose(out, (0, 3, 1, 2))
    return out


def _reference(x_nchw, weight_oihw, bias, *, stride=2, padding=1, norm=True,
               eps=1e-5, slope=0.2):
    y = lax.conv_general_dilated(
        x_nchw, weight_oihw, (stride, stride),
        ((padding, padding), (padding, padding)),
        dimension_numbers=("NCHW", "OIHW", "NCHW"))
    y = y + bias[None, :, None, None]
    if norm:
        mean = y.mean(axis=(2, 3), keepdims=True)
        var = ((y - mean) ** 2).mean(axis=(2, 3), keepdims=True)
        y = (y - mean) / jnp.sqrt(var + eps)
    return jnp.where(y > 0, y, slope * y)


if __name__ == "__main__":
    key = jax.random.PRNGKey(0)
    k_x, k_w, k_b = jax.random.split(key, 3)

    batch, inplanes, outplanes, spatial = 2, 4, 8, 16
    kernel_size = 4

    x = jax.random.normal(k_x, (batch, inplanes, spatial, spatial), dtype=jnp.float32)
    weight = jax.random.normal(
        k_w, (outplanes, inplanes, kernel_size, kernel_size), dtype=jnp.float32) * 0.1
    bias = jax.random.normal(k_b, (outplanes,), dtype=jnp.float32) * 0.1

    # norm=True (default BasicBlock)
    out = jax.block_until_ready(basic_block(x, weight, bias))
    ref = _reference(x, weight, bias)
    assert out.shape == (batch, outplanes, spatial // 2, spatial // 2)
    assert jnp.allclose(out, ref, atol=3e-2, rtol=3e-2), "mismatch vs. JAX reference (norm=True)"

    # norm=False path (conv + bias + LeakyReLU only)
    out_nn = jax.block_until_ready(basic_block(x, weight, bias, norm=False))
    ref_nn = _reference(x, weight, bias, norm=False)
    assert jnp.allclose(out_nn, ref_nn, atol=3e-2, rtol=3e-2), "mismatch vs. JAX reference (norm=False)"

    print("KERNEL_OK")
</pallas_src>

<mosaic_0001>
module attributes {stable_mosaic.version = 11 : i64} {
  func.func @_conv_in_lrelu_kernel(%arg0: i32, %arg1: i32, %arg2: memref<1x9x9x16xbf16, #tpu.memory_space<vmem>>, %arg3: memref<4x16x128xbf16, #tpu.memory_space<vmem>>, %arg4: memref<1x64x128xf32, #tpu.memory_space<vmem>>) attributes {dimension_semantics = [#tpu.dimension_semantics<parallel>, #tpu.dimension_semantics<parallel>], iteration_bounds = array<i64: 1, 2>, scalar_prefetch = 0 : i64, scratch_operands = 0 : i64, tpu.core_type = #tpu.core_type<tc>, window_params = [{transform_indices = @transform_0, window_bounds = array<i64: 1, 9, 9, 16>}, {transform_indices = @transform_1, window_bounds = array<i64: 4, 16, 128>}, {transform_indices = @transform_2, window_bounds = array<i64: 1, 64, 128>}]} {
    %c0 = arith.constant 0 : index
    %c0_0 = arith.constant 0 : index
    %c0_1 = arith.constant 0 : index
    %c0_2 = arith.constant 0 : index
    %0 = vector.load %arg2[%c0, %c0_0, %c0_1, %c0_2] : memref<1x9x9x16xbf16, #tpu.memory_space<vmem>>, vector<1x8x8x16xbf16>
    %1 = vector.shape_cast %0 : vector<1x8x8x16xbf16> to vector<8x8x16xbf16>
    %2 = vector.shape_cast %1 : vector<8x8x16xbf16> to vector<64x16xbf16>
    %c0_3 = arith.constant 0 : index
    %c0_4 = arith.constant 0 : index
    %c0_5 = arith.constant 0 : index
    %3 = vector.load %arg3[%c0_3, %c0_4, %c0_5] : memref<4x16x128xbf16, #tpu.memory_space<vmem>>, vector<1x16x128xbf16>
    %4 = vector.shape_cast %3 : vector<1x16x128xbf16> to vector<16x128xbf16>
    %cst = arith.constant dense<0.000000e+00> : vector<64x128xf32>
    %5 = tpu.matmul %2, %4, %cst {dimension_numbers = #tpu.dot_dimension_numbers<[1], [0], [0], [1], [0, 0, 1, 1], [], []>} : vector<64x16xbf16>, vector<16x128xbf16>, vector<64x128xf32> -> vector<64x128xf32>
    %c0_6 = arith.constant 0 : index
    %c0_7 = arith.constant 0 : index
    %c1 = arith.constant 1 : index
    %c0_8 = arith.constant 0 : index
    %6 = vector.load %arg2[%c0_6, %c0_7, %c1, %c0_8] : memref<1x9x9x16xbf16, #tpu.memory_space<vmem>>, vector<1x8x8x16xbf16>
    %7 = vector.shape_cast %6 : vector<1x8x8x16xbf16> to vector<8x8x16xbf16>
    %8 = vector.shape_cast %7 : vector<8x8x16xbf16> to vector<64x16xbf16>
    %c1_9 = arith.constant 1 : index
    %c0_10 = arith.constant 0 : index
    %c0_11 = arith.constant 0 : index
    %9 = vector.load %arg3[%c1_9, %c0_10, %c0_11] : memref<4x16x128xbf16, #tpu.memory_space<vmem>>, vector<1x16x128xbf16>
    %10 = vector.shape_cast %9 : vector<1x16x128xbf16> to vector<16x128xbf16>
    %cst_12 = arith.constant dense<0.000000e+00> : vector<64x128xf32>
    %11 = tpu.matmul %8, %10, %cst_12 {dimension_numbers = #tpu.dot_dimension_numbers<[1], [0], [0], [1], [0, 0, 1, 1], [], []>} : vector<64x16xbf16>, vector<16x128xbf16>, vector<64x128xf32> -> vector<64x128xf32>
    %12 = arith.addf %5, %11 : vector<64x128xf32>
    %c0_13 = arith.constant 0 : index
    %c1_14 = arith.constant 1 : index
    %c0_15 = arith.constant 0 : index
    %c0_16 = arith.constant 0 : index
    %13 = vector.load %arg2[%c0_13, %c1_14, %c0_15, %c0_16] : memref<1x9x9x16xbf16, #tpu.memory_space<vmem>>, vector<1x8x8x16xbf16>
    %14 = vector.shape_cast %13 : vector<1x8x8x16xbf16> to vector<8x8x16xbf16>
    %15 = vector.shape_cast %14 : vector<8x8x16xbf16> to vector<64x16xbf16>
    %c2 = arith.constant 2 : index
    %c0_17 = arith.constant 0 : index
    %c0_18 = arith.constant 0 : index
    %16 = vector.load %arg3[%c2, %c0_17, %c0_18] : memref<4x16x128xbf16, #tpu.memory_space<vmem>>, vector<1x16x128xbf16>
    %17 = vector.shape_cast %16 : vector<1x16x128xbf16> to vector<16x128xbf16>
    %cst_19 = arith.constant dense<0.000000e+00> : vector<64x128xf32>
    %18 = tpu.matmul %15, %17, %cst_19 {dimension_numbers = #tpu.dot_dimension_numbers<[1], [0], [0], [1], [0, 0, 1, 1], [], []>} : vector<64x16xbf16>, vector<16x128xbf16>, vector<64x128xf32> -> vector<64x128xf32>
    %19 = arith.addf %12, %18 : vector<64x128xf32>
    %c0_20 = arith.constant 0 : index
    %c1_21 = arith.constant 1 : index
    %c1_22 = arith.constant 1 : index
    %c0_23 = arith.constant 0 : index
    %20 = vector.load %arg2[%c0_20, %c1_21, %c1_22, %c0_23] : memref<1x9x9x16xbf16, #tpu.memory_space<vmem>>, vector<1x8x8x16xbf16>
    %21 = vector.shape_cast %20 : vector<1x8x8x16xbf16> to vector<8x8x16xbf16>
    %22 = vector.shape_cast %21 : vector<8x8x16xbf16> to vector<64x16xbf16>
    %c3 = arith.constant 3 : index
    %c0_24 = arith.constant 0 : index
    %c0_25 = arith.constant 0 : index
    %23 = vector.load %arg3[%c3, %c0_24, %c0_25] : memref<4x16x128xbf16, #tpu.memory_space<vmem>>, vector<1x16x128xbf16>
    %24 = vector.shape_cast %23 : vector<1x16x128xbf16> to vector<16x128xbf16>
    %cst_26 = arith.constant dense<0.000000e+00> : vector<64x128xf32>
    %25 = tpu.matmul %22, %24, %cst_26 {dimension_numbers = #tpu.dot_dimension_numbers<[1], [0], [0], [1], [0, 0, 1, 1], [], []>} : vector<64x16xbf16>, vector<16x128xbf16>, vector<64x128xf32> -> vector<64x128xf32>
    %26 = arith.addf %19, %25 : vector<64x128xf32>
    %cst_27 = arith.constant dense<0.000000e+00> : vector<128xf32>
    %27 = vector.multi_reduction <add>, %26, %cst_27 [0] : vector<64x128xf32> to vector<128xf32>
    %28 = vector.shape_cast %27 : vector<128xf32> to vector<1x128xf32>
    %cst_28 = arith.constant 1.562500e-02 : f32
    %29 = vector.broadcast %cst_28 : f32 to vector<1x128xf32>
    %30 = arith.mulf %28, %29 : vector<1x128xf32>
    %31 = arith.mulf %26, %26 : vector<64x128xf32>
    %cst_29 = arith.constant dense<0.000000e+00> : vector<128xf32>
    %32 = vector.multi_reduction <add>, %31, %cst_29 [0] : vector<64x128xf32> to vector<128xf32>
    %33 = vector.shape_cast %32 : vector<128xf32> to vector<1x128xf32>
    %cst_30 = arith.constant 1.562500e-02 : f32
    %34 = vector.broadcast %cst_30 : f32 to vector<1x128xf32>
    %35 = arith.mulf %33, %34 : vector<1x128xf32>
    %36 = arith.mulf %30, %30 : vector<1x128xf32>
    %37 = arith.subf %35, %36 : vector<1x128xf32>
    %cst_31 = arith.constant 9.99999974E-6 : f32
    %38 = vector.broadcast %cst_31 : f32 to vector<1x128xf32>
    %39 = arith.addf %37, %38 : vector<1x128xf32>
    %40 = math.rsqrt %39 : vector<1x128xf32>
    %41 = vector.broadcast %30 : vector<1x128xf32> to vector<64x128xf32>
    %42 = arith.subf %26, %41 : vector<64x128xf32>
    %cst_32 = arith.constant 0.000000e+00 : f32
    %43 = vector.broadcast %cst_32 : f32 to vector<64x128xf32>
    %44 = arith.cmpf ogt, %42, %43 : vector<64x128xf32>
    %cst_33 = arith.constant 2.000000e-01 : f32
    %45 = vector.broadcast %cst_33 : f32 to vector<1x128xf32>
    %46 = arith.mulf %40, %45 : vector<1x128xf32>
    %47 = vector.shape_cast %40 : vector<1x128xf32> to vector<1x128xf32>
    %48 = vector.broadcast %47 : vector<1x128xf32> to vector<64x128xf32>
    %49 = vector.shape_cast %46 : vector<1x128xf32> to vector<1x128xf32>
    %50 = vector.broadcast %49 : vector<1x128xf32> to vector<64x128xf32>
    %51 = arith.select %44, %48, %50 : vector<64x128xi1>, vector<64x128xf32>
    %52 = arith.mulf %42, %51 : vector<64x128xf32>
    %c0_34 = arith.constant 0 : index
    %c0_35 = arith.constant 0 : index
    %c0_36 = arith.constant 0 : index
    %53 = vector.load %arg4[%c0_34, %c0_35, %c0_36] : memref<1x64x128xf32, #tpu.memory_space<vmem>>, vector<1x64x128xf32>
    %54 = vector.shape_cast %53 : vector<1x64x128xf32> to vector<64x128xf32>
    %55 = vector.shape_cast %52 : vector<64x128xf32> to vector<1x64x128xf32>
    tpu.vector_store %arg4[%c0_34, %c0_35, %c0_36], %55 {strides = array<i32>} : memref<1x64x128xf32, #tpu.memory_space<vmem>>, vector<1x64x128xf32>,
    return
  }
  func.func @transform_0(%arg0: i32, %arg1: i32) -> (i32, i32, i32, i32) {
    %c0_i32 = arith.constant 0 : i32
    %c0_i32_0 = arith.constant 0 : i32
    %c0_i32_1 = arith.constant 0 : i32
    %c0_i32_2 = arith.constant 0 : i32
    return %arg1, %c0_i32, %c0_i32_0, %c0_i32_1 : i32, i32, i32, i32
  }
  func.func @transform_1(%arg0: i32, %arg1: i32) -> (i32, i32, i32) {
    %c0_i32 = arith.constant 0 : i32
    %c0_i32_0 = arith.constant 0 : i32
    %c0_i32_1 = arith.constant 0 : i32
    return %c0_i32, %c0_i32_0, %arg0 : i32, i32, i32
  }
  func.func @transform_2(%arg0: i32, %arg1: i32) -> (i32, i32, i32) {
    %c0_i32 = arith.constant 0 : i32
    %c0_i32_0 = arith.constant 0 : i32
    return %arg1, %c0_i32, %arg0 : i32, i32, i32
  }
}

</mosaic_0001>

<llo_original>
// kernel: tpu_custom_call.1
$region0: #{tpu_custom_call.1}
  #allocation0 [shape = 'u32[]', space=smem, size = 0x4, offset = 0x4, fixed_abs, tag = 'smem constant byte address 0x4 - core index']
  #allocation1 [shape = 'u32[72,128]{1,0:T(1,128)}', space=vmem, size = 0x9000, scoped, tag = 'internal scratch']
  %s0 = inlined_call_operand.vmem [shape: bf16[2,9,9,16], index: 0, kind: input, shape index: {}]
  %s1 = inlined_call_operand.vmem [shape: bf16[4,16,128], index: 1, kind: input, shape index: {}]
  %s2 = inlined_call_operand.hbm [shape: f32[2,64,128], index: 2, kind: output, shape index: {}]
  %s3 = sld [smem:[#allocation0]]
  $region41: #{tpu_custom_call.1} parent=0
    _
  %s5 = ssub.s32 1, %s3
  %s6 = scalar_select 0, %s5, %s3
  $region1: #{tpu_custom_call.1} parent=0
    #allocation2 [shape = 'u8[65536]{0}', space=vmem, size = 0x10000, scoped, tag = 'output window, operand 0']
    #allocation3 [shape = 's32[2]{0}', space=sflag, size = 0x8, scoped, tag = 'scoped memory for tpu_custom_call.1']
    %7 = vsyncpa [#allocation3], 0
    %s8 = scalar_lea.sflag [#allocation3], 1
    %9 = vsyncpa %s8, 0
    loop: start=0, step=1, limit=4
    $region2: #{tpu_custom_call.1} parent=1 // loop_pre_header
      _
    $region3: #{tpu_custom_call.1} parent=1 // loop_header
      %s11 = sphi 0, %s15
      %p12 = scmp.ge.s32.totalorder %s11, 4
      %s18 = sphi 0, %s30
      %s19 = sphi 0, %s26
      %s20 = sphi 0, %s18
      %s21 = sphi 0, %s19
      %s22 = sphi 0, %s20
      %s23 = sphi 0, %s21
      %s33 = sphi 0, %s35
      %s36 = sphi 0, %s33
      %s37 = sphi 0, %s36
      %s53 = sphi 0, %s37
      %s59 = sphi 0, %s61
      %s62 = sphi 0, %s59
      %s63 = sphi 0, %s62
      %s79 = sphi 0, %s63
      %s87 = sphi 0, %s89
      %s90 = sphi 0, %s87
      %s91 = sphi 0, %s90
      %s107 = sphi 0, %s91
    $region4: #{tpu_custom_call.1} parent=1 // loop_header_branch
      %14 = sbr.rel (%p12) target = $region8
    $region5: #{tpu_custom_call.1} parent=1 // loop_body
      %s16 = ssub.s32 %s11, 1
      %s17 = ssub.s32 %s11, 2
      %s24 = sadd.s32 1, %s19
      %p25 = scmp.ge.s32.totalorder %s24, 2
      %s26 = scalar_select %p25, 0, %s24
      %s27 = sadd.s32 1, %s18
      %s28 = scalar_select %p25, %s27, %s18
      %p29 = scmp.ge.s32.totalorder %s28, 1
      %s30 = scalar_select %p29, 0, %s28
      %s31 = ssub.s32 %s19, %s26
      %p32 = scmp.eq.s32.totalorder %s31, 0
      %s34 = sadd.s32 %s33, 1
      %s35 = scalar_select %p32, %s33, %s34
      %p38 = pneg %p32
      %p39 = scmp.eq.s32.totalorder %s11, 1
      %p40 = por %p38, %p39
      %p41 = scmp.ne.s32.totalorder %s33, %s36
      %p42 = scmp.eq.s32.totalorder %s11, 0
      %p43 = por %p41, %p42
      %p44 = scmp.ne.s32.totalorder %s33, %s36
      %p45 = scmp.eq.s32.totalorder %s16, 1
      %p46 = por %p44, %p45
      %p47 = scmp.ne.s32.totalorder %s36, %s37
      %p48 = scmp.eq.s32.totalorder %s16, 0
      %p49 = por %p47, %p48
      %p50 = scmp.ne.s32.totalorder %s36, %s37
      %p51 = scmp.eq.s32.totalorder %s17, 1
      %p52 = por %p50, %p51
      %p54 = scmp.ne.s32.totalorder %s37, %s53
      %p55 = scmp.eq.s32.totalorder %s17, 0
      %p56 = por %p54, %p55
      %s57 = ssub.s32 %s18, %s30
      %p58 = scmp.eq.s32.totalorder %s57, 0
      %s60 = sadd.s32 %s59, 1
      %s61 = scalar_select %p58, %s59, %s60
      %p64 = pneg %p58
      %p65 = scmp.eq.s32.totalorder %s11, 1
      %p66 = por %p64, %p65
      %p67 = scmp.ne.s32.totalorder %s59, %s62
      %p68 = scmp.eq.s32.totalorder %s11, 0
      %p69 = por %p67, %p68
      %p70 = scmp.ne.s32.totalorder %s59, %s62
      %p71 = scmp.eq.s32.totalorder %s16, 1
      %p72 = por %p70, %p71
      %p73 = scmp.ne.s32.totalorder %s62, %s63
      %p74 = scmp.eq.s32.totalorder %s16, 0
      %p75 = por %p73, %p74
      %p76 = scmp.ne.s32.totalorder %s62, %s63
      %p77 = scmp.eq.s32.totalorder %s17, 1
      %p78 = por %p76, %p77
      %p80 = scmp.ne.s32.totalorder %s63, %s79
      %p81 = scmp.eq.s32.totalorder %s17, 0
      %p82 = por %p80, %p81
      %s83 = ssub.s32 %s19, %s26
      %s84 = ssub.s32 %s18, %s30
      %s85 = sor.u32 %s83, %s84
      %p86 = scmp.eq.s32.totalorder %s85, 0
      %s88 = sadd.s32 %s87, 1
      %s89 = scalar_select %p86, %s87, %s88
      %p92 = pneg %p86
      %p93 = scmp.eq.s32.totalorder %s11, 1
      %p94 = por %p92, %p93
      %p95 = scmp.ne.s32.totalorder %s87, %s90
      %p96 = scmp.eq.s32.totalorder %s11, 0
      %p97 = por %p95, %p96
      %p98 = scmp.ne.s32.totalorder %s87, %s90
      %p99 = scmp.eq.s32.totalorder %s16, 1
      %p100 = por %p98, %p99
      %p101 = scmp.ne.s32.totalorder %s90, %s91
      %p102 = scmp.eq.s32.totalorder %s16, 0
      %p103 = por %p101, %p102
      %p104 = scmp.ne.s32.totalorder %s90, %s91
      %p105 = scmp.eq.s32.totalorder %s17, 1
      %p106 = por %p104, %p105
      %p108 = scmp.ne.s32.totalorder %s91, %s107
      %p109 = scmp.eq.s32.totalorder %s17, 0
      %p110 = por %p108, %p109
      %p111 = scmp.le.s32.totalorder 1, %s11
      %p112 = scmp.lt.s32.totalorder %s11, 3
      %p113 = pnand %p111, %p112
      %p114 = pneg %p113
      // Predicated region
      $region9: #{tpu_custom_call.1} parent=5 // pred_check
        _
      $region10: #{tpu_custom_call.1} parent=5 // pred_check_branch
        %116 = sbr.rel (%p113) target = $region12
      $region11: #{tpu_custom_call.1} parent=5 // pred_region
        %s117 = ssub.s32 %s11, 1
        // Predicated region
        $region13: #{tpu_custom_call.1} parent=11 // pred_check
          %p118 = pneg %p75
        $region14: #{tpu_custom_call.1} parent=11 // pred_check_branch
          %120 = sbr.rel (%p118) target = $region16
        $region15: #{tpu_custom_call.1} parent=11 // pred_region
          %p121 = scmp.lt.s32.totalorder %s20, 0
          %s122 = scalar_select %p121, %s20, 0
          %s123 = smul.addr %s122, 4
          %s124 = scalar_lea.vmem %s1, %s123
        $region16: #{tpu_custom_call.1} parent=11 // pred_fallthru
          _
      $region12: #{tpu_custom_call.1} parent=5 // pred_fallthru
        _
      %p125 = scmp.lt.s32.totalorder %s11, 2
      // Predicated region
      $region17: #{tpu_custom_call.1} parent=5 // pred_check
        %p126 = pneg %p125
      $region18: #{tpu_custom_call.1} parent=5 // pred_check_branch
        %128 = sbr.rel (%p126) target = $region20
      $region19: #{tpu_custom_call.1} parent=5 // pred_region
        // Predicated region
        $region21: #{tpu_custom_call.1} parent=19 // pred_check
          %p129 = pneg %p43
        $region22: #{tpu_custom_call.1} parent=19 // pred_check_branch
          %131 = sbr.rel (%p129) target = $region24
        $region23: #{tpu_custom_call.1} parent=19 // pred_region
          %p132 = scmp.lt.s32.totalorder %s19, 1
          %s133 = scalar_select %p132, %s19, 1
          %s134 = smul.addr %s133, 18
          %s135 = smul.addr %s134, 4
          %s136 = scalar_lea.vmem %s0, %s135
        $region24: #{tpu_custom_call.1} parent=19 // pred_fallthru
          _
      $region20: #{tpu_custom_call.1} parent=5 // pred_fallthru
        _
      %p137 = scmp.le.s32.totalorder 1, %s11
      %p138 = scmp.lt.s32.totalorder %s11, 3
      %p139 = pnand %p137, %p138
      %p140 = pneg %p139
      // Predicated region
      $region25: #{tpu_custom_call.1} parent=5 // pred_check
        _
      $region26: #{tpu_custom_call.1} parent=5 // pred_check_branch
        %142 = sbr.rel (%p139) target = $region28
      $region27: #{tpu_custom_call.1} parent=5 // pred_region
        %s143 = ssub.s32 %s11, 1
        %p144 = scmp.lt.s32.totalorder %s21, 1
        %s145 = scalar_select %p144, %s21, 1
        %s146 = smul.addr %s145, 18
        %s147 = smul.addr %s146, 4
        %s148 = scalar_lea.vmem %s0, %s147
        %p149 = pneg %p49
        %p150 = pneg %p46
        %p151 = scmp.lt.s32.totalorder %s20, 0
        %s152 = scalar_select %p151, %s20, 0
        %s153 = smul.addr %s152, 4
        %s154 = scalar_lea.vmem %s1, %s153
        %p155 = pneg %p75
        %p156 = pneg %p72
        %p157 = pneg %p103
        %p158 = pneg %p100
        %s159 = sand.u32 %s90, 1
        %s160 = scalar_lea.sflag [#allocation3], %s159
        %s161 = sand.u32 %s90, 1
        %s162 = smul.addr %s161, 64
        %s163 = scalar_lea.vmem [#allocation2], %s162
        %p164 = scmp.lt.s32.totalorder %s21, 1
        %s165 = scalar_select %p164, %s21, 1
        %s166 = smul.addr %s165, 18
        %s167 = smul.addr %s166, 4
        %s168 = scalar_lea.vmem %s0, %s167
        %p169 = scmp.lt.s32.totalorder %s20, 0
        %s170 = scalar_select %p169, %s20, 0
        %s171 = smul.addr %s170, 4
        %s172 = scalar_lea.vmem %s1, %s171
        %v174 = vld [vmem:[%s168] sm:$0xf]
        %v175 = vld [vmem:[%s168 + $0x8] sm:$0xf]
        %v176 = vld [vmem:[%s168 + $0x10] sm:$0xf]
        %v177 = vld [vmem:[%s168 + $0x18] sm:$0xf]
        %v178 = vld [vmem:[%s168 + $0x20] sm:$0xf]
        %v179 = vld [vmem:[%s168 + $0x28] sm:$0xf]
        %v180 = vld [vmem:[%s168 + $0x30] sm:$0xf]
        %v181 = vld [vmem:[%s168 + $0x38] sm:$0xf]
        %v182 = vld [vmem:[%s172] sm:$0xf]
        %v183 = vld [vmem:[%s172 + $0x4] sm:$0xf]
        %v184 = vld [vmem:[%s168 + $0x4] sm:$0x1]
        %v185 = vld [vmem:[%s168 + $0xc] sm:$0x1]
        %v186 = vld [vmem:[%s168 + $0x14] sm:$0x1]
        %v187 = vld [vmem:[%s168 + $0x1c] sm:$0x1]
        %v188 = vld [vmem:[%s168 + $0x24] sm:$0x1]
        %v189 = vld [vmem:[%s168 + $0x2c] sm:$0x1]
        %v190 = vld [vmem:[%s168 + $0x34] sm:$0x1]
        %v191 = vld [vmem:[%s168 + $0x3c] sm:$0x1]
        %vm192 = vsmask.f32 3328
        %vm193 = vsmask.f32 7440
        %vm194 = vmor %vm192, %vm193
        %v196 = vshrl.u32 %v174, 16
        %v198 = vrot.slane %v196, 4
        %v199 = vshll.u32 %v174, 16
        %v201 = vrot.slane %v199, 5
        %v202 = vor.u32 %v198, %v201
        %v203 = vrot.slane %v202, 4
        %v205 = vshll.u32 %v184, 16
        %v207 = vrot.slane %v205, 5
        %v208 = vsel %vm194, %v203, %v207
        %v210 = vshrl.u32 %v175, 16
        %v212 = vrot.slane %v210, 4
        %v213 = vshll.u32 %v175, 16
        %v215 = vrot.slane %v213, 5
        %v216 = vor.u32 %v212, %v215
        %v217 = vrot.slane %v216, 4
        %v219 = vshll.u32 %v185, 16
        %v221 = vrot.slane %v219, 5
        %v222 = vsel %vm194, %v217, %v221
        %v224 = vshrl.u32 %v176, 16
        %v226 = vrot.slane %v224, 4
        %v227 = vshll.u32 %v176, 16
        %v229 = vrot.slane %v227, 5
        %v230 = vor.u32 %v226, %v229
        %v231 = vrot.slane %v230, 4
        %v233 = vshll.u32 %v186, 16
        %v235 = vrot.slane %v233, 5
        %v236 = vsel %vm194, %v231, %v235
        %v238 = vshrl.u32 %v177, 16
        %v240 = vrot.slane %v238, 4
        %v241 = vshll.u32 %v177, 16
        %v243 = vrot.slane %v241, 5
        %v244 = vor.u32 %v240, %v243
        %v245 = vrot.slane %v244, 4
        %v247 = vshll.u32 %v187, 16
        %v249 = vrot.slane %v247, 5
        %v250 = vsel %vm194, %v245, %v249
        %v252 = vshrl.u32 %v178, 16
        %v254 = vrot.slane %v252, 4
        %v255 = vshll.u32 %v178, 16
        %v257 = vrot.slane %v255, 5
        %v258 = vor.u32 %v254, %v257
        %v259 = vrot.slane %v258, 4
        %v261 = vshll.u32 %v188, 16
        %v263 = vrot.slane %v261, 5
        %v264 = vsel %vm194, %v259, %v263
        %v266 = vshrl.u32 %v179, 16
        %v268 = vrot.slane %v266, 4
        %v269 = vshll.u32 %v179, 16
        %v271 = vrot.slane %v269, 5
        %v272 = vor.u32 %v268, %v271
        %v273 = vrot.slane %v272, 4
        %v275 = vshll.u32 %v189, 16
        %v277 = vrot.slane %v275, 5
        %v278 = vsel %vm194, %v273, %v277
        %v280 = vshrl.u32 %v180, 16
        %v282 = vrot.slane %v280, 4
        %v283 = vshll.u32 %v180, 16
        %v285 = vrot.slane %v283, 5
        %v286 = vor.u32 %v282, %v285
        %v287 = vrot.slane %v286, 4
        %v289 = vshll.u32 %v190, 16
        %v291 = vrot.slane %v289, 5
        %v292 = vsel %vm194, %v287, %v291
        %v294 = vshrl.u32 %v181, 16
        %v296 = vrot.slane %v294, 4
        %v297 = vshll.u32 %v181, 16
        %v299 = vrot.slane %v297, 5
        %v300 = vor.u32 %v296, %v299
        %v301 = vrot.slane %v300, 4
        %v303 = vshll.u32 %v191, 16
        %v305 = vrot.slane %v303, 5
        %v306 = vsel %vm194, %v301, %v305
        %s307 = scalar_lea.vmem %s172, 8
        %v308 = vld [vmem:[%s307] sm:$0xf]
        %v309 = vld [vmem:[%s307 + $0x4] sm:$0xf]
        %v310 = vunpack.c.l.b16 %v208
        %v311 = vunpack.c.l.b16 %v222
        %v312 = vunpack.c.l.b16 %v236
        %v313 = vunpack.c.l.b16 %v250
        %v314 = vunpack.c.l.b16 %v264
        %v315 = vunpack.c.l.b16 %v278
        %v316 = vunpack.c.l.b16 %v292
        %v317 = vunpack.c.l.b16 %v306
        %v318 = vpack.c.b16 %v311, %v310
        %v319 = vpack.c.b16 %v313, %v312
        %v320 = vpack.c.b16 %v315, %v314
        %v321 = vpack.c.b16 %v317, %v316
        %v324 = vunpack.c.l.b16 %v308
        %v325 = vunpack.c.l.b16 %v309
        %v326 = vpack.c.b16 %v325, %v324
        %vm328 = vcmask 130048
        %v330 = vsel %vm328, %v318, 0
        %v333 = vsel %vm328, %v319, 0
        %v336 = vsel %vm328, %v320, 0
        %v339 = vsel %vm328, %v321, 0
        %341 = vmatpush.bf16.msra.mxu0 0
        %342 = vmatpush.bf16.msra.mxu0 0
        %343 = vmatpush.bf16.msra.mxu0 0
        %344 = vmatpush.bf16.msra.mxu0 0
        %345 = vmatpush.bf16.msra.mxu0 0
        %346 = vmatpush.bf16.msra.mxu0 0
        %347 = vmatpush.bf16.msra.mxu0 0
        %348 = vmatpush.bf16.msra.mxu0 %v326
        %349 = vmatmul.bf16.gmra.mxu0 %v330
        %v350 = vpop.f32.mrf.mxu0
        %v351 = vadd.f32 0.0, %v350
        %v352 = vpop.f32.mrf.mxu0
        %v353 = vadd.f32 0.0, %v352
        %354 = vmatmul.bf16.gmra.mxu0 %v333
        %v355 = vpop.f32.mrf.mxu0
        %v356 = vadd.f32 0.0, %v355
        %v357 = vpop.f32.mrf.mxu0
        %v358 = vadd.f32 0.0, %v357
        %359 = vmatmul.bf16.gmra.mxu0 %v336
        %v360 = vpop.f32.mrf.mxu0
        %v361 = vadd.f32 0.0, %v360
        %v362 = vpop.f32.mrf.mxu0
        %v363 = vadd.f32 0.0, %v362
        %364 = vmatmul.bf16.gmra.mxu0 %v339
        %v365 = vpop.f32.mrf.mxu0
        %v366 = vadd.f32 0.0, %v365
        %v367 = vpop.f32.mrf.mxu0
        %v368 = vadd.f32 0.0, %v367
        %369 = vdwg.mxu0
        %v378 = vunpack.c.l.b16 %v174
        %v379 = vunpack.c.l.b16 %v175
        %v380 = vunpack.c.l.b16 %v176
        %v381 = vunpack.c.l.b16 %v177
        %v382 = vunpack.c.l.b16 %v178
        %v383 = vunpack.c.l.b16 %v179
        %v384 = vunpack.c.l.b16 %v180
        %v385 = vunpack.c.l.b16 %v181
        %v386 = vpack.c.b16 %v379, %v378
        %v387 = vpack.c.b16 %v381, %v380
        %v388 = vpack.c.b16 %v383, %v382
        %v389 = vpack.c.b16 %v385, %v384
        %v392 = vunpack.c.l.b16 %v182
        %v393 = vunpack.c.l.b16 %v183
        %v394 = vpack.c.b16 %v393, %v392
        %v397 = vsel %vm328, %v386, 0
        %v400 = vsel %vm328, %v387, 0
        %v403 = vsel %vm328, %v388, 0
        %v406 = vsel %vm328, %v389, 0
        %408 = vmatpush.bf16.msra.mxu0 0
        %409 = vmatpush.bf16.msra.mxu0 0
        %410 = vmatpush.bf16.msra.mxu0 0
        %411 = vmatpush.bf16.msra.mxu0 0
        %412 = vmatpush.bf16.msra.mxu0 0
        %413 = vmatpush.bf16.msra.mxu0 0
        %414 = vmatpush.bf16.msra.mxu0 0
        %415 = vmatpush.bf16.msra.mxu0 %v394
        %416 = vmatmul.bf16.gmra.mxu0 %v397
        %v417 = vpop.f32.mrf.mxu0
        %v418 = vadd.f32 %v351, %v417
        %v419 = vpop.f32.mrf.mxu0
        %v420 = vadd.f32 %v353, %v419
        %421 = vmatmul.bf16.gmra.mxu0 %v400
        %v422 = vpop.f32.mrf.mxu0
        %v423 = vadd.f32 %v356, %v422
        %v424 = vpop.f32.mrf.mxu0
        %v425 = vadd.f32 %v358, %v424
        %426 = vmatmul.bf16.gmra.mxu0 %v403
        %v427 = vpop.f32.mrf.mxu0
        %v428 = vadd.f32 %v361, %v427
        %v429 = vpop.f32.mrf.mxu0
        %v430 = vadd.f32 %v363, %v429
        %431 = vmatmul.bf16.gmra.mxu0 %v406
        %v432 = vpop.f32.mrf.mxu0
        %v433 = vadd.f32 %v366, %v432
        %v434 = vpop.f32.mrf.mxu0
        %v435 = vadd.f32 %v368, %v434
        %436 = vdwg.mxu0
        %s437 = scalar_lea.vmem %s168, 8
        %v438 = vld [vmem:[%s437] sm:$0xf]
        %v439 = vld [vmem:[%s437 + $0x8] sm:$0xf]
        %v440 = vld [vmem:[%s437 + $0x10] sm:$0xf]
        %v441 = vld [vmem:[%s437 + $0x18] sm:$0xf]
        %v442 = vld [vmem:[%s437 + $0x20] sm:$0xf]
        %v443 = vld [vmem:[%s437 + $0x28] sm:$0xf]
        %v444 = vld [vmem:[%s437 + $0x30] sm:$0xf]
        %v445 = vld [vmem:[%s437 + $0x38] sm:$0xf]
        %s446 = scalar_lea.vmem %s172, 16
        %v447 = vld [vmem:[%s446] sm:$0xf]
        %v448 = vld [vmem:[%s446 + $0x4] sm:$0xf]
        %v457 = vunpack.c.l.b16 %v438
        %v458 = vunpack.c.l.b16 %v439
        %v459 = vunpack.c.l.b16 %v440
        %v460 = vunpack.c.l.b16 %v441
        %v461 = vunpack.c.l.b16 %v442
        %v462 = vunpack.c.l.b16 %v443
        %v463 = vunpack.c.l.b16 %v444
        %v464 = vunpack.c.l.b16 %v445
        %v465 = vpack.c.b16 %v458, %v457
        %v466 = vpack.c.b16 %v460, %v459
        %v467 = vpack.c.b16 %v462, %v461
        %v468 = vpack.c.b16 %v464, %v463
        %v471 = vunpack.c.l.b16 %v447
        %v472 = vunpack.c.l.b16 %v448
        %v473 = vpack.c.b16 %v472, %v471
        %v476 = vsel %vm328, %v465, 0
        %v479 = vsel %vm328, %v466, 0
        %v482 = vsel %vm328, %v467, 0
        %v485 = vsel %vm328, %v468, 0
        %487 = vmatpush.bf16.msra.mxu0 0
        %488 = vmatpush.bf16.msra.mxu0 0
        %489 = vmatpush.bf16.msra.mxu0 0
        %490 = vmatpush.bf16.msra.mxu0 0
        %491 = vmatpush.bf16.msra.mxu0 0
        %492 = vmatpush.bf16.msra.mxu0 0
        %493 = vmatpush.bf16.msra.mxu0 0
        %494 = vmatpush.bf16.msra.mxu0 %v473
        %495 = vmatmul.bf16.gmra.mxu0 %v476
        %v496 = vpop.f32.mrf.mxu0
        %v497 = vadd.f32 0.0, %v496
        %v498 = vpop.f32.mrf.mxu0
        %v499 = vadd.f32 0.0, %v498
        %500 = vmatmul.bf16.gmra.mxu0 %v479
        %v501 = vpop.f32.mrf.mxu0
        %v502 = vadd.f32 0.0, %v501
        %v503 = vpop.f32.mrf.mxu0
        %v504 = vadd.f32 0.0, %v503
        %505 = vmatmul.bf16.gmra.mxu0 %v482
        %v506 = vpop.f32.mrf.mxu0
        %v507 = vadd.f32 0.0, %v506
        %v508 = vpop.f32.mrf.mxu0
        %v509 = vadd.f32 0.0, %v508
        %510 = vmatmul.bf16.gmra.mxu0 %v485
        %v511 = vpop.f32.mrf.mxu0
        %v512 = vadd.f32 0.0, %v511
        %v513 = vpop.f32.mrf.mxu0
        %v514 = vadd.f32 0.0, %v513
        %515 = vdwg.mxu0
        %v516 = vadd.f32 %v418, %v497
        %v517 = vadd.f32 %v420, %v499
        %v518 = vadd.f32 %v423, %v502
        %v519 = vadd.f32 %v425, %v504
        %v520 = vadd.f32 %v428, %v507
        %v521 = vadd.f32 %v430, %v509
        %v522 = vadd.f32 %v433, %v512
        %v523 = vadd.f32 %v435, %v514
        %v524 = vld [vmem:[%s437] sm:$0xf]
        %v525 = vld [vmem:[%s437 + $0x4] sm:$0x1]
        %v526 = vld [vmem:[%s437 + $0x8] sm:$0xf]
        %v527 = vld [vmem:[%s437 + $0xc] sm:$0x1]
        %v528 = vld [vmem:[%s437 + $0x10] sm:$0xf]
        %v529 = vld [vmem:[%s437 + $0x14] sm:$0x1]
        %v530 = vld [vmem:[%s437 + $0x18] sm:$0xf]
        %v531 = vld [vmem:[%s437 + $0x1c] sm:$0x1]
        %v532 = vld [vmem:[%s437 + $0x20] sm:$0xf]
        %v533 = vld [vmem:[%s437 + $0x24] sm:$0x1]
        %v534 = vld [vmem:[%s437 + $0x28] sm:$0xf]
        %v535 = vld [vmem:[%s437 + $0x2c] sm:$0x1]
        %v536 = vld [vmem:[%s437 + $0x30] sm:$0xf]
        %v537 = vld [vmem:[%s437 + $0x34] sm:$0x1]
        %v538 = vld [vmem:[%s437 + $0x38] sm:$0xf]
        %v539 = vld [vmem:[%s437 + $0x3c] sm:$0x1]
        %v541 = vshrl.u32 %v524, 16
        %v543 = vrot.slane %v541, 4
        %v544 = vshll.u32 %v524, 16
        %v546 = vrot.slane %v544, 5
        %v547 = vor.u32 %v543, %v546
        %v548 = vrot.slane %v547, 4
        %v550 = vshll.u32 %v525, 16
        %v552 = vrot.slane %v550, 5
        %v553 = vsel %vm194, %v548, %v552
        %v555 = vshrl.u32 %v526, 16
        %v557 = vrot.slane %v555, 4
        %v558 = vshll.u32 %v526, 16
        %v560 = vrot.slane %v558, 5
        %v561 = vor.u32 %v557, %v560
        %v562 = vrot.slane %v561, 4
        %v564 = vshll.u32 %v527, 16
        %v566 = vrot.slane %v564, 5
        %v567 = vsel %vm194, %v562, %v566
        %v569 = vshrl.u32 %v528, 16
        %v571 = vrot.slane %v569, 4
        %v572 = vshll.u32 %v528, 16
        %v574 = vrot.slane %v572, 5
        %v575 = vor.u32 %v571, %v574
        %v576 = vrot.slane %v575, 4
        %v578 = vshll.u32 %v529, 16
        %v580 = vrot.slane %v578, 5
        %v581 = vsel %vm194, %v576, %v580
        %v583 = vshrl.u32 %v530, 16
        %v585 = vrot.slane %v583, 4
        %v586 = vshll.u32 %v530, 16
        %v588 = vrot.slane %v586, 5
        %v589 = vor.u32 %v585, %v588
        %v590 = vrot.slane %v589, 4
        %v592 = vshll.u32 %v531, 16
        %v594 = vrot.slane %v592, 5
        %v595 = vsel %vm194, %v590, %v594
        %v597 = vshrl.u32 %v532, 16
        %v599 = vrot.slane %v597, 4
        %v600 = vshll.u32 %v532, 16
        %v602 = vrot.slane %v600, 5
        %v603 = vor.u32 %v599, %v602
        %v604 = vrot.slane %v603, 4
        %v606 = vshll.u32 %v533, 16
        %v608 = vrot.slane %v606, 5
        %v609 = vsel %vm194, %v604, %v608
        %v611 = vshrl.u32 %v534, 16
        %v613 = vrot.slane %v611, 4
        %v614 = vshll.u32 %v534, 16
        %v616 = vrot.slane %v614, 5
        %v617 = vor.u32 %v613, %v616
        %v618 = vrot.slane %v617, 4
        %v620 = vshll.u32 %v535, 16
        %v622 = vrot.slane %v620, 5
        %v623 = vsel %vm194, %v618, %v622
        %v625 = vshrl.u32 %v536, 16
        %v627 = vrot.slane %v625, 4
        %v628 = vshll.u32 %v536, 16
        %v630 = vrot.slane %v628, 5
        %v631 = vor.u32 %v627, %v630
        %v632 = vrot.slane %v631, 4
        %v634 = vshll.u32 %v537, 16
        %v636 = vrot.slane %v634, 5
        %v637 = vsel %vm194, %v632, %v636
        %v639 = vshrl.u32 %v538, 16
        %v641 = vrot.slane %v639, 4
        %v642 = vshll.u32 %v538, 16
        %v644 = vrot.slane %v642, 5
        %v645 = vor.u32 %v641, %v644
        %v646 = vrot.slane %v645, 4
        %v648 = vshll.u32 %v539, 16
        %v650 = vrot.slane %v648, 5
        %v651 = vsel %vm194, %v646, %v650
        %s652 = scalar_lea.vmem %s172, 24
        %v653 = vld [vmem:[%s652] sm:$0xf]
        %v654 = vld [vmem:[%s652 + $0x4] sm:$0xf]
        %v655 = vunpack.c.l.b16 %v553
        %v656 = vunpack.c.l.b16 %v567
        %v657 = vunpack.c.l.b16 %v581
        %v658 = vunpack.c.l.b16 %v595
        %v659 = vunpack.c.l.b16 %v609
        %v660 = vunpack.c.l.b16 %v623
        %v661 = vunpack.c.l.b16 %v637
        %v662 = vunpack.c.l.b16 %v651
        %v663 = vpack.c.b16 %v656, %v655
        %v664 = vpack.c.b16 %v658, %v657
        %v665 = vpack.c.b16 %v660, %v659
        %v666 = vpack.c.b16 %v662, %v661
        %v669 = vunpack.c.l.b16 %v653
        %v670 = vunpack.c.l.b16 %v654
        %v671 = vpack.c.b16 %v670, %v669
        %v674 = vsel %vm328, %v663, 0
        %v677 = vsel %vm328, %v664, 0
        %v680 = vsel %vm328, %v665, 0
        %v683 = vsel %vm328, %v666, 0
        %685 = vmatpush.bf16.msra.mxu0 0
        %686 = vmatpush.bf16.msra.mxu0 0
        %687 = vmatpush.bf16.msra.mxu0 0
        %688 = vmatpush.bf16.msra.mxu0 0
        %689 = vmatpush.bf16.msra.mxu0 0
        %690 = vmatpush.bf16.msra.mxu0 0
        %691 = vmatpush.bf16.msra.mxu0 0
        %692 = vmatpush.bf16.msra.mxu0 %v671
        %693 = vmatmul.bf16.gmra.mxu0 %v674
        %v694 = vpop.f32.mrf.mxu0
        %v695 = vadd.f32 0.0, %v694
        %v696 = vpop.f32.mrf.mxu0
        %v697 = vadd.f32 0.0, %v696
        %698 = vmatmul.bf16.gmra.mxu0 %v677
        %v699 = vpop.f32.mrf.mxu0
        %v700 = vadd.f32 0.0, %v699
        %v701 = vpop.f32.mrf.mxu0
        %v702 = vadd.f32 0.0, %v701
        %703 = vmatmul.bf16.gmra.mxu0 %v680
        %v704 = vpop.f32.mrf.mxu0
        %v705 = vadd.f32 0.0, %v704
        %v706 = vpop.f32.mrf.mxu0
        %v707 = vadd.f32 0.0, %v706
        %708 = vmatmul.bf16.gmra.mxu0 %v683
        %v709 = vpop.f32.mrf.mxu0
        %v710 = vadd.f32 0.0, %v709
        %v711 = vpop.f32.mrf.mxu0
        %v712 = vadd.f32 0.0, %v711
        %713 = vdwg.mxu0
        %v714 = vadd.f32 %v516, %v695
        %v715 = vadd.f32 %v517, %v697
        %v716 = vadd.f32 %v518, %v700
        %v717 = vadd.f32 %v519, %v702
        %v718 = vadd.f32 %v520, %v705
        %v719 = vadd.f32 %v521, %v707
        %v720 = vadd.f32 %v522, %v710
        %v721 = vadd.f32 %v523, %v712
        %v722 = vadd.f32 %v714, %v715
        %v723 = vadd.f32 %v722, %v716
        %v724 = vadd.f32 %v723, %v717
        %v725 = vadd.f32 %v724, %v718
        %v726 = vadd.f32 %v725, %v719
        %v727 = vadd.f32 %v726, %v720
        %v728 = vadd.f32 %v727, %v721
        %v729 = vrot.slane %v728, 4
        %v730 = vadd.f32 %v728, %v729
        %v731 = vrot.slane %v730, 2
        %v732 = vadd.f32 %v730, %v731
        %v733 = vrot.slane %v732, 1
        %v734 = vadd.f32 %v732, %v733
        %v735 = vmul.f32 %v734, 0.015625
        %v736 = vmul.f32 %v714, %v714
        %v737 = vmul.f32 %v715, %v715
        %v738 = vmul.f32 %v716, %v716
        %v739 = vmul.f32 %v717, %v717
        %v740 = vmul.f32 %v718, %v718
        %v741 = vmul.f32 %v719, %v719
        %v742 = vmul.f32 %v720, %v720
        %v743 = vmul.f32 %v721, %v721
        %v744 = vadd.f32 %v736, %v737
        %v745 = vadd.f32 %v744, %v738
        %v746 = vadd.f32 %v745, %v739
        %v747 = vadd.f32 %v746, %v740
        %v748 = vadd.f32 %v747, %v741
        %v749 = vadd.f32 %v748, %v742
        %v750 = vadd.f32 %v749, %v743
        %v751 = vrot.slane %v750, 4
        %v752 = vadd.f32 %v750, %v751
        %v753 = vrot.slane %v752, 2
        %v754 = vadd.f32 %v752, %v753
        %v755 = vrot.slane %v754, 1
        %v756 = vadd.f32 %v754, %v755
        %v757 = vmul.f32 %v756, 0.015625
        %v758 = vmul.f32 %v735, %v735
        %v759 = vsub.f32 %v757, %v758
        %v760 = vadd.f32 %v759, 1e-05
        %v761 = vrsqrt.pop %v760
        %v762 = vmul.f32 %v761, %v760
        %v763 = vmul.f32 %v762, %v761
        %v764 = vmul.f32 0.5, %v763
        %v765 = vsub.f32 1.5, %v764
        %v766 = vmul.f32 %v761, %v765
        %vm767 = vweird.f32 %v760
        %vm768 = vweird.f32 %v761
        %vm769 = vmor %vm767, %vm768
        %v770 = vsel %vm769, %v761, %v766
        %v771 = vsub.f32 %v714, %v735
        %v772 = vsub.f32 %v715, %v735
        %v773 = vsub.f32 %v716, %v735
        %v774 = vsub.f32 %v717, %v735
        %v775 = vsub.f32 %v718, %v735
        %v776 = vsub.f32 %v719, %v735
        %v777 = vsub.f32 %v720, %v735
        %v778 = vsub.f32 %v721, %v735
        %vm779 = vcmp.gt.f32.partialorder %v771, 0.0
        %vm780 = vcmp.gt.f32.partialorder %v772, 0.0
        %vm781 = vcmp.gt.f32.partialorder %v773, 0.0
        %vm782 = vcmp.gt.f32.partialorder %v774, 0.0
        %vm783 = vcmp.gt.f32.partialorder %v775, 0.0
        %vm784 = vcmp.gt.f32.partialorder %v776, 0.0
        %vm785 = vcmp.gt.f32.partialorder %v777, 0.0
        %vm786 = vcmp.gt.f32.partialorder %v778, 0.0
        %v787 = vmul.f32 %v770, 0.2
        %v788 = vsel %vm779, %v770, %v787
        %v789 = vsel %vm780, %v770, %v787
        %v790 = vsel %vm781, %v770, %v787
        %v791 = vsel %vm782, %v770, %v787
        %v792 = vsel %vm783, %v770, %v787
        %v793 = vsel %vm784, %v770, %v787
        %v794 = vsel %vm785, %v770, %v787
        %v795 = vsel %vm786, %v770, %v787
        %v796 = vmul.f32 %v771, %v788
        %v797 = vmul.f32 %v772, %v789
        %v798 = vmul.f32 %v773, %v790
        %v799 = vmul.f32 %v774, %v791
        %v800 = vmul.f32 %v775, %v792
        %v801 = vmul.f32 %v776, %v793
        %v802 = vmul.f32 %v777, %v794
        %v803 = vmul.f32 %v778, %v795
        %804 = vst [vmem:[%s163] sm:$0xff] %v796
        %805 = vst [vmem:[%s163 + $0x8] sm:$0xff] %v797
        %806 = vst [vmem:[%s163 + $0x10] sm:$0xff] %v798
        %807 = vst [vmem:[%s163 + $0x18] sm:$0xff] %v799
        %808 = vst [vmem:[%s163 + $0x20] sm:$0xff] %v800
        %809 = vst [vmem:[%s163 + $0x28] sm:$0xff] %v801
        %810 = vst [vmem:[%s163 + $0x30] sm:$0xff] %v802
        %811 = vst [vmem:[%s163 + $0x38] sm:$0xff] %v803
        %s812 = sand.u32 %s90, 1
        %s813 = scalar_lea.sflag [#allocation3], %s812
        %s814 = sand.u32 %s90, 1
        %s815 = smul.addr %s814, 64
        %s816 = scalar_lea.vmem [#allocation2], %s815
        // Predicated region
        $region29: #{tpu_custom_call.1} parent=27 // pred_check
          %p817 = pneg %p100
        $region30: #{tpu_custom_call.1} parent=27 // pred_check_branch
          %819 = sbr.rel (%p817) target = $region32
        $region31: #{tpu_custom_call.1} parent=27 // pred_region
          %821 = vsyncadd %s813, 0
          %s822 = smul.addr %s21, 8
          %s823 = sadd.s32 %s20, %s822
          %s824 = smul.addr %s823, 8
          %s825 = scalar_lea.hbm %s2, %s824
          %s826 = sshll.u32 %s816, 4
          %s827 = int_to_ptr.vmem [resolvable:$true] %s826
          %s828 = sshll.u32 %s825, 4
          %s829 = int_to_ptr.hbm [resolvable:$true] %s828
          %834 = dma.vmem_to_hbm [thread:$0]  %s827, 1024, %s829, %s813, 128, 128, 8
        $region32: #{tpu_custom_call.1} parent=27 // pred_fallthru
          _
      $region28: #{tpu_custom_call.1} parent=5 // pred_fallthru
        _
      %p835 = scmp.le.s32.totalorder 2, %s11
      // Predicated region
      $region33: #{tpu_custom_call.1} parent=5 // pred_check
        %p836 = pneg %p835
      $region34: #{tpu_custom_call.1} parent=5 // pred_check_branch
        %838 = sbr.rel (%p836) target = $region36
      $region35: #{tpu_custom_call.1} parent=5 // pred_region
        %s839 = ssub.s32 %s11, 2
        // Predicated region
        $region37: #{tpu_custom_call.1} parent=35 // pred_check
          %p840 = pneg %p106
        $region38: #{tpu_custom_call.1} parent=35 // pred_check_branch
          %842 = sbr.rel (%p840) target = $region40
        $region39: #{tpu_custom_call.1} parent=35 // pred_region
          %s843 = sand.u32 %s91, 1
          %s844 = scalar_lea.sflag [#allocation3], %s843
          %s845 = sand.u32 %s91, 1
          %s846 = smul.addr %s845, 64
          %s847 = scalar_lea.vmem [#allocation2], %s846
          %849 = dma.done %s844, 1024
        $region40: #{tpu_custom_call.1} parent=35 // pred_fallthru
          _
      $region36: #{tpu_custom_call.1} parent=5 // pred_fallthru
        _
    $region6: #{tpu_custom_call.1} parent=1 // loop_footer
      %s15 = sadd.s32 1, %s11
    $region7: #{tpu_custom_call.1} parent=1 // loop_footer_branch
      %10 = sbr.rel target = $region3
    $region8: #{tpu_custom_call.1} parent=1 // loop_exit
      _
    %850 = vsyncpa [#allocation3], 1
    %s851 = scalar_lea.sflag [#allocation3], 1
    %852 = vsyncpa %s851, 1

</llo_original>
